<compile_context>
chip_gen: v7x
topology: tpu7x:2x2x1
jax: 0.10.0
libtpu: 0.0.40
codegen_flags: <defaults>
</compile_context>

<pallas_src>
import functools

import jax
import jax.numpy as jnp
from jax.experimental import pallas as pl
from jax.experimental.pallas import tpu as pltpu


def _nonlocal_pos_kernel(x_ref, a_ref, wg_ref, bg_ref, we_ref, be_ref, o_ref,
                         *, hw_padded, batch_block, compute_dtype):
    C_red = wg_ref.shape[0]

    # g: 1x1 conv == channel matmul on the batch-folded lane axis (C_in, Bt*HWp)
    x_g = jnp.dot(wg_ref[...], x_ref[...],
                  preferred_element_type=jnp.float32) + bg_ref[...]      # (C_red, Bt*HWp)

    # Dominant MXU matmul with the positional similarity matrix.
    # Fold batch into M when Bt > 1: (C_red, Bt*HWp) row-major is exactly
    # (C_red*Bt, HWp), so the reshape is a pure reinterpretation.
    if batch_block > 1:
        x_g = x_g.reshape(C_red * batch_block, hw_padded)
    x_g = x_g.astype(compute_dtype)
    x_out = jnp.dot(x_g, a_ref[...],
                    preferred_element_type=jnp.float32)                  # (M, HWp)
    if batch_block > 1:
        x_out = x_out.reshape(C_red, batch_block * hw_padded)            # (C_red, Bt*HWp)

    # extend: 1x1 conv with eval-mode BatchNorm folded into weight/bias.
    y = jnp.dot(we_ref[...], x_out,
                preferred_element_type=jnp.float32) + be_ref[...]        # (C_in, Bt*HWp)
    o_ref[...] = y.astype(o_ref.dtype)


def _pick_batch_block(B, C_red):
    """Fold batches into the matmul M axis (target M ~ 128), but keep >= 2
    parallel grid steps when B >= 2 so both v7x TensorCores get work."""
    target = max(1, 128 // max(C_red, 1))
    upper = B if B < 2 else max(1, B // 2)
    limit = max(1, min(target, upper))
    bt = 1
    for d in range(1, B + 1):
        if B % d == 0 and d <= limit:
            bt = d
    return bt


def nonlocal_pos_forward(x_nchw, params, eps=1e-5,
                         compute_dtype=jnp.float32, batch_block=None):
    B, C_in, H, W = x_nchw.shape
    HW = H * W
    C_red = params["wg"].shape[0]

    # Lane-dense padding of the flattened spatial axis.
    HWp = ((HW + 127) // 128) * 128
    pad = HWp - HW

    # ---- positional similarity matrix (get_pos_sim + scaler_norm), hoisted ----
    xs = jnp.tile(jnp.arange(W, dtype=jnp.float32)[None, :], (H, 1)).reshape(-1)
    ys = jnp.tile(jnp.arange(H, dtype=jnp.float32)[:, None], (1, W)).reshape(-1)
    A = (xs[:, None] - xs[None, :]) ** 2 + (ys[:, None] - ys[None, :]) ** 2
    # scaler_norm with trace-time constants: min = 0, max = (H-1)^2 + (W-1)^2
    denom = float((H - 1) ** 2 + (W - 1) ** 2)
    A = A * (1.0 / denom if denom > 0.0 else 1.0)   # guard degenerate 1x1 spatial
    if pad > 0:
        A = jnp.pad(A, ((0, pad), (0, pad)))        # zero rows keep padded lanes inert
    A = A.astype(compute_dtype)

    # ---- fold eval-mode BatchNorm into the extend conv ----
    scale = params["gamma"] / jnp.sqrt(params["var"] + eps)
    we = (params["we"] * scale[:, None]).astype(jnp.float32)              # (C_in, C_red)
    be = ((params["be"] - params["mean"]) * scale + params["beta"])
    be = be.reshape(-1, 1).astype(jnp.float32)                            # (C_in, 1)

    # ---- batch-folded layout: (C_in, B * HWp), batch on the lane axis ----
    x_flat = x_nchw.reshape(B, C_in, HW).astype(jnp.float32)
    if pad > 0:
        x_flat = jnp.pad(x_flat, ((0, 0), (0, 0), (0, pad)))
    x2 = jnp.transpose(x_flat, (1, 0, 2)).reshape(C_in, B * HWp)

    if batch_block is None:
        batch_block = _pick_batch_block(B, C_red)
    Bt = batch_block
    n_blocks = B // Bt
    lane = Bt * HWp

    kernel = functools.partial(_nonlocal_pos_kernel, hw_padded=HWp,
                               batch_block=Bt, compute_dtype=compute_dtype)

    # Explicit VMEM budget: A (double-buffered spec, constant index) +
    # double-buffered x/out blocks + headroom; cap at 64 MiB (v7x physical).
    a_bytes = HWp * HWp * jnp.dtype(compute_dtype).itemsize
    blk_bytes = C_in * lane * 4
    vmem_bytes = int(min(64 << 20, max(16 << 20, 2 * a_bytes + 6 * blk_bytes)))

    const2 = lambda b: (0, 0)

    out = pl.pallas_call(
        kernel,
        out_shape=jax.ShapeDtypeStruct((C_in, B * HWp), jnp.float32),
        grid_spec=pltpu.PrefetchScalarGridSpec(
            num_scalar_prefetch=0,
            grid=(n_blocks,),
            in_specs=[
                pl.BlockSpec((C_in, lane), lambda b: (0, b)),   # x  (batch-folded)
                pl.BlockSpec((HWp, HWp), const2),               # A  (VMEM-resident)
                pl.BlockSpec((C_red, C_in), const2),            # g weight
                pl.BlockSpec((C_red, 1), const2),               # g bias
                pl.BlockSpec((C_in, C_red), const2),            # extend weight (BN folded)
                pl.BlockSpec((C_in, 1), const2),                # extend bias   (BN folded)
            ],
            out_specs=pl.BlockSpec((C_in, lane), lambda b: (0, b)),
        ),
        compiler_params=pltpu.CompilerParams(
            dimension_semantics=("parallel",),
            vmem_limit_bytes=vmem_bytes),
    )(x2, A,
      params["wg"].astype(jnp.float32),
      params["bg"].reshape(-1, 1).astype(jnp.float32),
      we, be)

    out = out.reshape(C_in, B, HWp)[:, :, :HW]
    out = jnp.transpose(out, (1, 0, 2)).reshape(B, C_in, H, W)
    return out


def nonlocal_pos_reference(x, params, eps=1e-5):
    """Plain-JAX f32 reference mirroring the PyTorch forward (sanity check)."""
    B, C, H, W = x.shape
    HW = H * W
    xs = jnp.tile(jnp.arange(W, dtype=jnp.float32).reshape(1, W), (H, 1)).reshape(-1)
    ys = jnp.tile(jnp.arange(H, dtype=jnp.float32).reshape(H, 1), (1, W)).reshape(-1)
    A = jnp.abs(xs[:, None] - xs[None, :]) ** 2 + jnp.abs(ys[:, None] - ys[None, :]) ** 2
    A = (A - A.min()) / (A.max() - A.min())
    xf = x.reshape(B, C, HW)
    xg = jnp.einsum('rc,bcn->brn', params["wg"], xf) + params["bg"][None, :, None]
    xo = jnp.einsum('brn,nm->brm', xg, A)
    y = jnp.einsum('cr,brn->bcn', params["we"], xo) + params["be"][None, :, None]
    y = (y - params["mean"][None, :, None]) * (
        params["gamma"][None, :, None] / jnp.sqrt(params["var"][None, :, None] + eps)
    ) + params["beta"][None, :, None]
    return y.reshape(B, C, H, W)


if __name__ == "__main__":
    B, C_in, C_red, H, W = 2, 8, 4, 16, 16

    key = jax.random.PRNGKey(0)
    kx, kwg, kbg, kwe, kbe, kg, kb, km, kv = jax.random.split(key, 9)

    x = jax.random.normal(kx, (B, C_in, H, W), dtype=jnp.float32)

    params = {
        # g: Conv2d(C_in -> C_red, 1x1)  (weight stored as (C_red, C_in))
        "wg": jax.random.normal(kwg, (C_red, C_in), dtype=jnp.float32) * 0.1,
        "bg": jax.random.normal(kbg, (C_red,), dtype=jnp.float32) * 0.1,
        # extend: Conv2d(C_red -> C_in, 1x1)
        "we": jax.random.normal(kwe, (C_in, C_red), dtype=jnp.float32) * 0.1,
        "be": jax.random.normal(kbe, (C_in,), dtype=jnp.float32) * 0.1,
        # SyncBatchNorm(C_in), eval mode
        "gamma": 1.0 + 0.1 * jax.random.normal(kg, (C_in,), dtype=jnp.float32),
        "beta": 0.1 * jax.random.normal(kb, (C_in,), dtype=jnp.float32),
        "mean": 0.1 * jax.random.normal(km, (C_in,), dtype=jnp.float32),
        "var": jax.random.uniform(kv, (C_in,), dtype=jnp.float32,
                                  minval=0.5, maxval=1.5),
    }

    out = nonlocal_pos_forward(x, params)       # default compute_dtype = float32
    out = jax.block_until_ready(out)

    ref = jax.block_until_ready(nonlocal_pos_reference(x, params))
    rel_err = float(jnp.max(jnp.abs(out - ref)) / (jnp.max(jnp.abs(ref)) + 1e-6))
    assert jnp.all(jnp.isfinite(out)), "non-finite output"
    assert rel_err < 1e-3, f"kernel mismatch vs reference, rel_err={rel_err}"

    print("KERNEL_OK")
</pallas_src>

<mosaic_0001>
module attributes {stable_mosaic.version = 11 : i64} {
  func.func @_nonlocal_pos_kernel(%arg0: i32, %arg1: memref<8x256xf32, #tpu.memory_space<vmem>>, %arg2: memref<256x256xf32, #tpu.memory_space<vmem>>, %arg3: memref<4x8xf32, #tpu.memory_space<vmem>>, %arg4: memref<4x1xf32, #tpu.memory_space<vmem>>, %arg5: memref<8x4xf32, #tpu.memory_space<vmem>>, %arg6: memref<8x1xf32, #tpu.memory_space<vmem>>, %arg7: memref<8x256xf32, #tpu.memory_space<vmem>>) attributes {dimension_semantics = [#tpu.dimension_semantics<parallel>], iteration_bounds = array<i64: 2>, scalar_prefetch = 0 : i64, scratch_operands = 0 : i64, tpu.core_type = #tpu.core_type<tc>, window_params = [{transform_indices = @transform_0, window_bounds = array<i64: 8, 256>}, {pipeline_mode = #tpu.pipeline_mode<synchronous>, transform_indices = @transform_1, window_bounds = array<i64: 256, 256>}, {pipeline_mode = #tpu.pipeline_mode<synchronous>, transform_indices = @transform_2, window_bounds = array<i64: 4, 8>}, {pipeline_mode = #tpu.pipeline_mode<synchronous>, transform_indices = @transform_3, window_bounds = array<i64: 4, 1>}, {pipeline_mode = #tpu.pipeline_mode<synchronous>, transform_indices = @transform_4, window_bounds = array<i64: 8, 4>}, {pipeline_mode = #tpu.pipeline_mode<synchronous>, transform_indices = @transform_5, window_bounds = array<i64: 8, 1>}, {transform_indices = @transform_6, window_bounds = array<i64: 8, 256>}]} {
    %c0 = arith.constant 0 : index
    %c0_0 = arith.constant 0 : index
    %0 = vector.load %arg3[%c0, %c0_0] : memref<4x8xf32, #tpu.memory_space<vmem>>, vector<4x8xf32>
    %c0_1 = arith.constant 0 : index
    %c0_2 = arith.constant 0 : index
    %1 = vector.load %arg1[%c0_1, %c0_2] : memref<8x256xf32, #tpu.memory_space<vmem>>, vector<8x256xf32>
    %cst = arith.constant dense<0.000000e+00> : vector<4x256xf32>
    %2 = tpu.matmul %0, %1, %cst {dimension_numbers = #tpu.dot_dimension_numbers<[1], [0], [0], [1], [0, 0, 1, 1], [], []>} : vector<4x8xf32>, vector<8x256xf32>, vector<4x256xf32> -> vector<4x256xf32>
    %c0_3 = arith.constant 0 : index
    %c0_4 = arith.constant 0 : index
    %3 = vector.load %arg4[%c0_3, %c0_4] : memref<4x1xf32, #tpu.memory_space<vmem>>, vector<4x1xf32>
    %4 = vector.broadcast %3 : vector<4x1xf32> to vector<4x256xf32>
    %5 = arith.addf %2, %4 : vector<4x256xf32>
    %c0_5 = arith.constant 0 : index
    %c0_6 = arith.constant 0 : index
    %6 = vector.load %arg2[%c0_5, %c0_6] : memref<256x256xf32, #tpu.memory_space<vmem>>, vector<256x256xf32>
    %cst_7 = arith.constant dense<0.000000e+00> : vector<4x256xf32>
    %7 = tpu.matmul %5, %6, %cst_7 {dimension_numbers = #tpu.dot_dimension_numbers<[1], [0], [0], [1], [0, 0, 1, 1], [], []>} : vector<4x256xf32>, vector<256x256xf32>, vector<4x256xf32> -> vector<4x256xf32>
    %c0_8 = arith.constant 0 : index
    %c0_9 = arith.constant 0 : index
    %8 = vector.load %arg5[%c0_8, %c0_9] : memref<8x4xf32, #tpu.memory_space<vmem>>, vector<8x4xf32>
    %cst_10 = arith.constant dense<0.000000e+00> : vector<8x256xf32>
    %9 = tpu.matmul %8, %7, %cst_10 {dimension_numbers = #tpu.dot_dimension_numbers<[1], [0], [0], [1], [0, 0, 1, 1], [], []>} : vector<8x4xf32>, vector<4x256xf32>, vector<8x256xf32> -> vector<8x256xf32>
    %c0_11 = arith.constant 0 : index
    %c0_12 = arith.constant 0 : index
    %10 = vector.load %arg6[%c0_11, %c0_12] : memref<8x1xf32, #tpu.memory_space<vmem>>, vector<8x1xf32>
    %11 = vector.broadcast %10 : vector<8x1xf32> to vector<8x256xf32>
    %12 = arith.addf %9, %11 : vector<8x256xf32>
    %c0_13 = arith.constant 0 : index
    %c0_14 = arith.constant 0 : index
    %13 = vector.load %arg7[%c0_13, %c0_14] : memref<8x256xf32, #tpu.memory_space<vmem>>, vector<8x256xf32>
    tpu.vector_store %arg7[%c0_13, %c0_14], %12 {strides = array<i32>} : memref<8x256xf32, #tpu.memory_space<vmem>>, vector<8x256xf32>,
    return
  }
  func.func @transform_0(%arg0: i32) -> (i32, i32) {
    %c0_i32 = arith.constant 0 : i32
    %c0_i32_0 = arith.constant 0 : i32
    return %c0_i32, %arg0 : i32, i32
  }
  func.func @transform_1(%arg0: i32) -> (i32, i32) {
    %c0_i32 = arith.constant 0 : i32
    %c0_i32_0 = arith.constant 0 : i32
    %c0_i32_1 = arith.constant 0 : i32
    return %c0_i32, %c0_i32_0 : i32, i32
  }
  func.func @transform_2(%arg0: i32) -> (i32, i32) {
    %c0_i32 = arith.constant 0 : i32
    %c0_i32_0 = arith.constant 0 : i32
    %c0_i32_1 = arith.constant 0 : i32
    return %c0_i32, %c0_i32_0 : i32, i32
  }
  func.func @transform_3(%arg0: i32) -> (i32, i32) {
    %c0_i32 = arith.constant 0 : i32
    %c0_i32_0 = arith.constant 0 : i32
    %c0_i32_1 = arith.constant 0 : i32
    return %c0_i32, %c0_i32_0 : i32, i32
  }
  func.func @transform_4(%arg0: i32) -> (i32, i32) {
    %c0_i32 = arith.constant 0 : i32
    %c0_i32_0 = arith.constant 0 : i32
    %c0_i32_1 = arith.constant 0 : i32
    return %c0_i32, %c0_i32_0 : i32, i32
  }
  func.func @transform_5(%arg0: i32) -> (i32, i32) {
    %c0_i32 = arith.constant 0 : i32
    %c0_i32_0 = arith.constant 0 : i32
    %c0_i32_1 = arith.constant 0 : i32
    return %c0_i32, %c0_i32_0 : i32, i32
  }
  func.func @transform_6(%arg0: i32) -> (i32, i32) {
    %c0_i32 = arith.constant 0 : i32
    %c0_i32_0 = arith.constant 0 : i32
    return %c0_i32, %arg0 : i32, i32
  }
}

</mosaic_0001>

<llo_original>
// kernel: tpu_custom_call.1
$region0: #{tpu_custom_call.1}
  #allocation0 [shape = 'u32[]', space=smem, size = 0x4, offset = 0x4, fixed_abs, tag = 'smem constant byte address 0x4 - core index']
  #allocation1 [shape = 'u32[144,128]{1,0:T(1,128)}', space=vmem, size = 0x12000, scoped, tag = 'internal scratch']
  %s0 = inlined_call_operand.hbm [shape: f32[8,512], index: 0, kind: input, shape index: {}]
  %s1 = inlined_call_operand.hbm [shape: f32[256,256], index: 1, kind: input, shape index: {}]
  %s2 = inlined_call_operand.vmem [shape: f32[4,8], index: 2, kind: input, shape index: {}]
  %s3 = inlined_call_operand.vmem [shape: f32[4,1], index: 3, kind: input, shape index: {}]
  %s4 = inlined_call_operand.vmem [shape: f32[8,4], index: 4, kind: input, shape index: {}]
  %s5 = inlined_call_operand.vmem [shape: f32[8,1], index: 5, kind: input, shape index: {}]
  %s6 = inlined_call_operand.hbm [shape: f32[8,512], index: 6, kind: output, shape index: {}]
  %s7 = sld [smem:[#allocation0]]
  $region65: #{tpu_custom_call.1} parent=0
    _
  %s9 = ssub.s32 1, %s7
  %s10 = scalar_select 0, %s9, %s7
  $region1: #{tpu_custom_call.1} parent=0
    #allocation2 [shape = 'u8[16384]{0}', space=vmem, size = 0x4000, scoped, tag = 'input window, operand 0']
    #allocation3 [shape = 's32[2]{0}', space=sflag, size = 0x8, scoped, tag = 'scoped memory for tpu_custom_call.1']
    #allocation4 [shape = 's32[2]{0}', space=sflag, size = 0x8, scoped, tag = 'scoped memory for tpu_custom_call.1']
    #allocation5 [shape = 'u8[262144]{0}', space=vmem, size = 0x40000, scoped, tag = 'input window, operand 1, single buffered']
    #allocation6 [shape = 's32[1]{0}', space=sflag, size = 0x4, scoped, tag = 'scoped memory for tpu_custom_call.1']
    #allocation7 [shape = 'u8[16384]{0}', space=vmem, size = 0x4000, scoped, tag = 'output window, operand 0']
    %11 = vsyncpa [#allocation3], 0
    %s12 = scalar_lea.sflag [#allocation3], 1
    %13 = vsyncpa %s12, 0
    %14 = vsyncpa [#allocation6], 0
    %15 = vsyncpa [#allocation4], 0
    %s16 = scalar_lea.sflag [#allocation4], 1
    %17 = vsyncpa %s16, 0
    loop: start=0, step=1, limit=4
    $region2: #{tpu_custom_call.1} parent=1 // loop_pre_header
      _
    $region3: #{tpu_custom_call.1} parent=1 // loop_header
      %s19 = sphi 0, %s23
      %p20 = scmp.ge.s32.totalorder %s19, 4
      %s29 = sphi 0, %s31
      %s32 = sphi 0, %s29
      %s33 = sphi 0, %s32
      %s49 = sphi 0, %s33
      %s53 = sphi 0, %s53
      %s55 = sphi 0, %s53
      %s56 = sphi 0, %s55
      %s70 = sphi 0, %s56
      %s74 = sphi 0, %s74
      %s76 = sphi 0, %s74
      %s77 = sphi 0, %s76
      %s91 = sphi 0, %s77
      %s95 = sphi 0, %s95
      %s97 = sphi 0, %s95
      %s98 = sphi 0, %s97
      %s112 = sphi 0, %s98
      %s116 = sphi 0, %s116
      %s118 = sphi 0, %s116
      %s119 = sphi 0, %s118
      %s133 = sphi 0, %s119
      %s137 = sphi 0, %s137
      %s139 = sphi 0, %s137
      %s140 = sphi 0, %s139
      %s154 = sphi 0, %s140
      %s160 = sphi 0, %s162
      %s163 = sphi 0, %s160
      %s164 = sphi 0, %s163
      %s180 = sphi 0, %s164
    $region4: #{tpu_custom_call.1} parent=1 // loop_header_branch
      %22 = sbr.rel (%p20) target = $region8
    $region5: #{tpu_custom_call.1} parent=1 // loop_body
      %s24 = ssub.s32 %s19, 1
      %s25 = ssub.s32 %s19, 2
      %s26 = sadd.s32 %s19, 1
      %s27 = ssub.s32 %s19, %s26
      %p28 = scmp.eq.s32.totalorder %s27, 0
      %s30 = sadd.s32 %s29, 1
      %s31 = scalar_select %p28, %s29, %s30
      %p34 = pneg %p28
      %p35 = scmp.eq.s32.totalorder %s19, 1
      %p36 = por %p34, %p35
      %p37 = scmp.ne.s32.totalorder %s29, %s32
      %p38 = scmp.eq.s32.totalorder %s19, 0
      %p39 = por %p37, %p38
      %p40 = scmp.ne.s32.totalorder %s29, %s32
      %p41 = scmp.eq.s32.totalorder %s24, 1
      %p42 = por %p40, %p41
      %p43 = scmp.ne.s32.totalorder %s32, %s33
      %p44 = scmp.eq.s32.totalorder %s24, 0
      %p45 = por %p43, %p44
      %p46 = scmp.ne.s32.totalorder %s32, %s33
      %p47 = scmp.eq.s32.totalorder %s25, 1
      %p48 = por %p46, %p47
      %p50 = scmp.ne.s32.totalorder %s33, %s49
      %p51 = scmp.eq.s32.totalorder %s25, 0
      %p52 = por %p50, %p51
      %s54 = sadd.s32 %s53, 1
      %p57 = scmp.eq.s32.totalorder %s19, 1
      %p58 = scmp.ne.s32.totalorder %s53, %s55
      %p59 = scmp.eq.s32.totalorder %s19, 0
      %p60 = por %p58, %p59
      %p61 = scmp.ne.s32.totalorder %s53, %s55
      %p62 = scmp.eq.s32.totalorder %s24, 1
      %p63 = por %p61, %p62
      %p64 = scmp.ne.s32.totalorder %s55, %s56
      %p65 = scmp.eq.s32.totalorder %s24, 0
      %p66 = por %p64, %p65
      %p67 = scmp.ne.s32.totalorder %s55, %s56
      %p68 = scmp.eq.s32.totalorder %s25, 1
      %p69 = por %p67, %p68
      %p71 = scmp.ne.s32.totalorder %s56, %s70
      %p72 = scmp.eq.s32.totalorder %s25, 0
      %p73 = por %p71, %p72
      %s75 = sadd.s32 %s74, 1
      %p78 = scmp.eq.s32.totalorder %s19, 1
      %p79 = scmp.ne.s32.totalorder %s74, %s76
      %p80 = scmp.eq.s32.totalorder %s19, 0
      %p81 = por %p79, %p80
      %p82 = scmp.ne.s32.totalorder %s74, %s76
      %p83 = scmp.eq.s32.totalorder %s24, 1
      %p84 = por %p82, %p83
      %p85 = scmp.ne.s32.totalorder %s76, %s77
      %p86 = scmp.eq.s32.totalorder %s24, 0
      %p87 = por %p85, %p86
      %p88 = scmp.ne.s32.totalorder %s76, %s77
      %p89 = scmp.eq.s32.totalorder %s25, 1
      %p90 = por %p88, %p89
      %p92 = scmp.ne.s32.totalorder %s77, %s91
      %p93 = scmp.eq.s32.totalorder %s25, 0
      %p94 = por %p92, %p93
      %s96 = sadd.s32 %s95, 1
      %p99 = scmp.eq.s32.totalorder %s19, 1
      %p100 = scmp.ne.s32.totalorder %s95, %s97
      %p101 = scmp.eq.s32.totalorder %s19, 0
      %p102 = por %p100, %p101
      %p103 = scmp.ne.s32.totalorder %s95, %s97
      %p104 = scmp.eq.s32.totalorder %s24, 1
      %p105 = por %p103, %p104
      %p106 = scmp.ne.s32.totalorder %s97, %s98
      %p107 = scmp.eq.s32.totalorder %s24, 0
      %p108 = por %p106, %p107
      %p109 = scmp.ne.s32.totalorder %s97, %s98
      %p110 = scmp.eq.s32.totalorder %s25, 1
      %p111 = por %p109, %p110
      %p113 = scmp.ne.s32.totalorder %s98, %s112
      %p114 = scmp.eq.s32.totalorder %s25, 0
      %p115 = por %p113, %p114
      %s117 = sadd.s32 %s116, 1
      %p120 = scmp.eq.s32.totalorder %s19, 1
      %p121 = scmp.ne.s32.totalorder %s116, %s118
      %p122 = scmp.eq.s32.totalorder %s19, 0
      %p123 = por %p121, %p122
      %p124 = scmp.ne.s32.totalorder %s116, %s118
      %p125 = scmp.eq.s32.totalorder %s24, 1
      %p126 = por %p124, %p125
      %p127 = scmp.ne.s32.totalorder %s118, %s119
      %p128 = scmp.eq.s32.totalorder %s24, 0
      %p129 = por %p127, %p128
      %p130 = scmp.ne.s32.totalorder %s118, %s119
      %p131 = scmp.eq.s32.totalorder %s25, 1
      %p132 = por %p130, %p131
      %p134 = scmp.ne.s32.totalorder %s119, %s133
      %p135 = scmp.eq.s32.totalorder %s25, 0
      %p136 = por %p134, %p135
      %s138 = sadd.s32 %s137, 1
      %p141 = scmp.eq.s32.totalorder %s19, 1
      %p142 = scmp.ne.s32.totalorder %s137, %s139
      %p143 = scmp.eq.s32.totalorder %s19, 0
      %p144 = por %p142, %p143
      %p145 = scmp.ne.s32.totalorder %s137, %s139
      %p146 = scmp.eq.s32.totalorder %s24, 1
      %p147 = por %p145, %p146
      %p148 = scmp.ne.s32.totalorder %s139, %s140
      %p149 = scmp.eq.s32.totalorder %s24, 0
      %p150 = por %p148, %p149
      %p151 = scmp.ne.s32.totalorder %s139, %s140
      %p152 = scmp.eq.s32.totalorder %s25, 1
      %p153 = por %p151, %p152
      %p155 = scmp.ne.s32.totalorder %s140, %s154
      %p156 = scmp.eq.s32.totalorder %s25, 0
      %p157 = por %p155, %p156
      %s158 = ssub.s32 %s19, %s26
      %p159 = scmp.eq.s32.totalorder %s158, 0
      %s161 = sadd.s32 %s160, 1
      %s162 = scalar_select %p159, %s160, %s161
      %p165 = pneg %p159
      %p166 = scmp.eq.s32.totalorder %s19, 1
      %p167 = por %p165, %p166
      %p168 = scmp.ne.s32.totalorder %s160, %s163
      %p169 = scmp.eq.s32.totalorder %s19, 0
      %p170 = por %p168, %p169
      %p171 = scmp.ne.s32.totalorder %s160, %s163
      %p172 = scmp.eq.s32.totalorder %s24, 1
      %p173 = por %p171, %p172
      %p174 = scmp.ne.s32.totalorder %s163, %s164
      %p175 = scmp.eq.s32.totalorder %s24, 0
      %p176 = por %p174, %p175
      %p177 = scmp.ne.s32.totalorder %s163, %s164
      %p178 = scmp.eq.s32.totalorder %s25, 1
      %p179 = por %p177, %p178
      %p181 = scmp.ne.s32.totalorder %s164, %s180
      %p182 = scmp.eq.s32.totalorder %s25, 0
      %p183 = por %p181, %p182
      %p184 = scmp.le.s32.totalorder 1, %s19
      %p185 = scmp.lt.s32.totalorder %s19, 3
      %p186 = pnand %p184, %p185
      %p187 = pneg %p186
      // Predicated region
      $region9: #{tpu_custom_call.1} parent=5 // pred_check
        _
      $region10: #{tpu_custom_call.1} parent=5 // pred_check_branch
        %189 = sbr.rel (%p186) target = $region12
      $region11: #{tpu_custom_call.1} parent=5 // pred_region
        %s190 = ssub.s32 %s19, 1
        // Predicated region
        $region13: #{tpu_custom_call.1} parent=11 // pred_check
          %p191 = pneg %p66
        $region14: #{tpu_custom_call.1} parent=11 // pred_check_branch
          %193 = sbr.rel (%p191) target = $region16
        $region15: #{tpu_custom_call.1} parent=11 // pred_region
          %s195 = ssub.s32 8192, 8192
          %196 = vsyncadd [#allocation6], %s195
          %s197 = sshll.u32 [#allocation5], 4
          %s198 = int_to_ptr.vmem [resolvable:$true] %s197
          %203 = dma.hbm_to_vmem [thread:$0]  %s1, 8192, %s198, [#allocation6], 256, 256, 16
        $region16: #{tpu_custom_call.1} parent=11 // pred_fallthru
          _
        // Predicated region
        $region17: #{tpu_custom_call.1} parent=11 // pred_check
          %p204 = pneg %p87
        $region18: #{tpu_custom_call.1} parent=11 // pred_check_branch
          %206 = sbr.rel (%p204) target = $region20
        $region19: #{tpu_custom_call.1} parent=11 // pred_region
          _
        $region20: #{tpu_custom_call.1} parent=11 // pred_fallthru
          _
        // Predicated region
        $region21: #{tpu_custom_call.1} parent=11 // pred_check
          %p207 = pneg %p108
        $region22: #{tpu_custom_call.1} parent=11 // pred_check_branch
          %209 = sbr.rel (%p207) target = $region24
        $region23: #{tpu_custom_call.1} parent=11 // pred_region
          _
        $region24: #{tpu_custom_call.1} parent=11 // pred_fallthru
          _
        // Predicated region
        $region25: #{tpu_custom_call.1} parent=11 // pred_check
          %p210 = pneg %p129
        $region26: #{tpu_custom_call.1} parent=11 // pred_check_branch
          %212 = sbr.rel (%p210) target = $region28
        $region27: #{tpu_custom_call.1} parent=11 // pred_region
          _
        $region28: #{tpu_custom_call.1} parent=11 // pred_fallthru
          _
        // Predicated region
        $region29: #{tpu_custom_call.1} parent=11 // pred_check
          %p213 = pneg %p150
        $region30: #{tpu_custom_call.1} parent=11 // pred_check_branch
          %215 = sbr.rel (%p213) target = $region32
        $region31: #{tpu_custom_call.1} parent=11 // pred_region
          _
        $region32: #{tpu_custom_call.1} parent=11 // pred_fallthru
          _
      $region12: #{tpu_custom_call.1} parent=5 // pred_fallthru
        _
      %p216 = scmp.lt.s32.totalorder %s19, 2
      // Predicated region
      $region33: #{tpu_custom_call.1} parent=5 // pred_check
        %p217 = pneg %p216
      $region34: #{tpu_custom_call.1} parent=5 // pred_check_branch
        %219 = sbr.rel (%p217) target = $region36
      $region35: #{tpu_custom_call.1} parent=5 // pred_region
        // Predicated region
        $region37: #{tpu_custom_call.1} parent=35 // pred_check
          %p220 = pneg %p39
        $region38: #{tpu_custom_call.1} parent=35 // pred_check_branch
          %222 = sbr.rel (%p220) target = $region40
        $region39: #{tpu_custom_call.1} parent=35 // pred_region
          %s223 = sand.u32 %s29, 1
          %s224 = scalar_lea.sflag [#allocation3], %s223
          %s225 = sand.u32 %s29, 1
          %s226 = smul.addr %s225, 16
          %s227 = scalar_lea.vmem [#allocation2], %s226
          %s228 = smul.u32 2, %s19
          %s230 = ssub.s32 256, 256
          %231 = vsyncadd %s224, %s230
          %s232 = smul.addr %s228, 128
          %s233 = scalar_lea.hbm %s0, %s232
          %s235 = sshll.u32 %s227, 4
          %s236 = int_to_ptr.vmem [resolvable:$true] %s235
          %238 = dma.hbm_to_vmem [thread:$0]  %s233, 256, %s236, %s224
        $region40: #{tpu_custom_call.1} parent=35 // pred_fallthru
          _
      $region36: #{tpu_custom_call.1} parent=5 // pred_fallthru
        _
      %p239 = scmp.le.s32.totalorder 1, %s19
      %p240 = scmp.lt.s32.totalorder %s19, 3
      %p241 = pnand %p239, %p240
      %p242 = pneg %p241
      // Predicated region
      $region41: #{tpu_custom_call.1} parent=5 // pred_check
        _
      $region42: #{tpu_custom_call.1} parent=5 // pred_check_branch
        %244 = sbr.rel (%p241) target = $region44
      $region43: #{tpu_custom_call.1} parent=5 // pred_region
        %s245 = ssub.s32 %s19, 1
        %s246 = sand.u32 %s32, 1
        %s247 = scalar_lea.sflag [#allocation3], %s246
        %s248 = sand.u32 %s32, 1
        %s249 = smul.addr %s248, 16
        %s250 = scalar_lea.vmem [#allocation2], %s249
        // Predicated region
        $region45: #{tpu_custom_call.1} parent=43 // pred_check
          %p251 = pneg %p45
        $region46: #{tpu_custom_call.1} parent=43 // pred_check_branch
          %253 = sbr.rel (%p251) target = $region48
        $region47: #{tpu_custom_call.1} parent=43 // pred_region
          %254 = dma.done %s247, 256
        $region48: #{tpu_custom_call.1} parent=43 // pred_fallthru
          _
        // Predicated region
        $region49: #{tpu_custom_call.1} parent=43 // pred_check
          %p255 = pneg %p66
        $region50: #{tpu_custom_call.1} parent=43 // pred_check_branch
          %257 = sbr.rel (%p255) target = $region52
        $region51: #{tpu_custom_call.1} parent=43 // pred_region
          %258 = dma.done [#allocation6], 8192
        $region52: #{tpu_custom_call.1} parent=43 // pred_fallthru
          _
        %s259 = sand.u32 %s32, 1
        %s260 = scalar_lea.sflag [#allocation3], %s259
        %s261 = sand.u32 %s32, 1
        %s262 = smul.addr %s261, 16
        %s263 = scalar_lea.vmem [#allocation2], %s262
        %p264 = pneg %p45
        %p265 = pneg %p42
        %p266 = pneg %p66
        %p267 = pneg %p63
        %p268 = pneg %p87
        %p269 = pneg %p84
        %p270 = pneg %p108
        %p271 = pneg %p105
        %p272 = pneg %p129
        %p273 = pneg %p126
        %p274 = pneg %p150
        %p275 = pneg %p147
        %p276 = pneg %p176
        %p277 = pneg %p173
        %s278 = sand.u32 %s163, 1
        %s279 = scalar_lea.sflag [#allocation4], %s278
        %s280 = sand.u32 %s163, 1
        %s281 = smul.addr %s280, 16
        %s282 = scalar_lea.vmem [#allocation7], %s281
        %s283 = smul.u32 2, %s24
        %s284 = smul.u32 2, %s24
        %v285 = vld [vmem:[%s2] sm:$0xf]
        %v286 = vld [vmem:[%s250] sm:$0xff]
        %v287 = vld [vmem:[%s250 + $0x8] sm:$0xff]
        %v288 = vld [vmem:[%s3] sm:$0xf]
        %290 = vset.pattern.permute.xlu0 0
        %291 = vperm.xlu0 %290, %v288
        %v292 = vpop.permute.xlu0 %291
        %vm294 = vcmask 64512
        %v296 = vsel %vm294, %v285, 0
        %298 = vmatprep.subr.mxu0 %v287
        %299 = vmatpush1.msra.mxu0 %v286
        %300 = vmatprep.subr.mxu0 0.0
        %301 = vmatpush1.msra.mxu0 0.0
        %302 = vmatprep.subr.mxu0 0.0
        %303 = vmatpush1.msra.mxu0 0.0
        %304 = vmatprep.subr.mxu0 0.0
        %305 = vmatpush1.msra.mxu0 0.0
        %306 = vmatprep.subr.mxu0 0.0
        %307 = vmatpush1.msra.mxu0 0.0
        %308 = vmatprep.subr.mxu0 0.0
        %309 = vmatpush1.msra.mxu0 0.0
        %310 = vmatprep.subr.mxu0 0.0
        %311 = vmatpush1.msra.mxu0 0.0
        %312 = vmatprep.subr.mxu0 0.0
        %313 = vmatpush1.msra.mxu0 0.0
        %314 = vmatprep.subr.mxu0 0.0
        %315 = vmatpush1.msra.mxu0 0.0
        %316 = vmatprep.subr.mxu0 0.0
        %317 = vmatpush1.msra.mxu0 0.0
        %318 = vmatprep.subr.mxu0 0.0
        %319 = vmatpush1.msra.mxu0 0.0
        %320 = vmatprep.subr.mxu0 0.0
        %321 = vmatpush1.msra.mxu0 0.0
        %322 = vmatprep.subr.mxu0 0.0
        %323 = vmatpush1.msra.mxu0 0.0
        %324 = vmatprep.subr.mxu0 0.0
        %325 = vmatpush1.msra.mxu0 0.0
        %326 = vmatprep.subr.mxu0 0.0
        %327 = vmatpush1.msra.mxu0 0.0
        %328 = vmatprep.subr.mxu0 0.0
        %329 = vmatpush1.msra.mxu0 0.0
        %330 = vmatprep.subr.mxu0 0.0
        %331 = vmatpush1.msra.mxu0 0.0
        %332 = vmatprep.subr.mxu0 0.0
        %333 = vmatpush1.msra.mxu0 0.0
        %334 = vmatprep.subr.mxu0 0.0
        %335 = vmatpush1.msra.mxu0 0.0
        %336 = vmatprep.subr.mxu0 0.0
        %337 = vmatpush1.msra.mxu0 0.0
        %338 = vmatprep.subr.mxu0 0.0
        %339 = vmatpush1.msra.mxu0 0.0
        %340 = vmatprep.subr.mxu0 0.0
        %341 = vmatpush1.msra.mxu0 0.0
        %342 = vmatprep.subr.mxu0 0.0
        %343 = vmatpush1.msra.mxu0 0.0
        %344 = vmatprep.subr.mxu0 0.0
        %345 = vmatpush1.msra.mxu0 0.0
        %346 = vmatprep.subr.mxu0 0.0
        %347 = vmatpush1.msra.mxu0 0.0
        %348 = vmatprep.subr.mxu0 0.0
        %349 = vmatpush1.msra.mxu0 0.0
        %350 = vmatprep.subr.mxu0 0.0
        %351 = vmatpush1.msra.mxu0 0.0
        %352 = vmatprep.subr.mxu0 0.0
        %353 = vmatpush1.msra.mxu0 0.0
        %354 = vmatprep.subr.mxu0 0.0
        %355 = vmatpush1.msra.mxu0 0.0
        %356 = vmatprep.subr.mxu0 0.0
        %357 = vmatpush1.msra.mxu0 0.0
        %358 = vmatprep.subr.mxu0 0.0
        %359 = vmatpush1.msra.mxu0 0.0
        %360 = vmatprep.subr.mxu0 0.0
        %361 = vmatpush1.msra.mxu0 0.0
        %362 = vmatprep.mubr.f32.mxu0 0.0
        %363 = vmatmul.mubr.f32.gmra.mrb[0].mxu0 %v296
        %v364 = vpop.f32.mrb[0].mxu0
        %v365 = vadd.f32 %v292, %v364
        %v366 = vpop.f32.mrb[0].mxu0
        %v367 = vadd.f32 %v292, %v366
        %368 = vdwg.mxu0
        %v369 = vld [vmem:[#allocation5] sm:$0xff]
        %v370 = vld [vmem:[#allocation5 + $0x8] sm:$0xff]
        %v371 = vld [vmem:[#allocation5 + $0x10] sm:$0xff]
        %v372 = vld [vmem:[#allocation5 + $0x18] sm:$0xff]
        %v373 = vld [vmem:[#allocation5 + $0x20] sm:$0xff]
        %v374 = vld [vmem:[#allocation5 + $0x28] sm:$0xff]
        %v375 = vld [vmem:[#allocation5 + $0x30] sm:$0xff]
        %v376 = vld [vmem:[#allocation5 + $0x38] sm:$0xff]
        %v377 = vld [vmem:[#allocation5 + $0x40] sm:$0xff]
        %v378 = vld [vmem:[#allocation5 + $0x48] sm:$0xff]
        %v379 = vld [vmem:[#allocation5 + $0x50] sm:$0xff]
        %v380 = vld [vmem:[#allocation5 + $0x58] sm:$0xff]
        %v381 = vld [vmem:[#allocation5 + $0x60] sm:$0xff]
        %v382 = vld [vmem:[#allocation5 + $0x68] sm:$0xff]
        %v383 = vld [vmem:[#allocation5 + $0x70] sm:$0xff]
        %v384 = vld [vmem:[#allocation5 + $0x78] sm:$0xff]
        %v385 = vld [vmem:[#allocation5 + $0x80] sm:$0xff]
        %v386 = vld [vmem:[#allocation5 + $0x88] sm:$0xff]
        %v387 = vld [vmem:[#allocation5 + $0x90] sm:$0xff]
        %v388 = vld [vmem:[#allocation5 + $0x98] sm:$0xff]
        %v389 = vld [vmem:[#allocation5 + $0xa0] sm:$0xff]
        %v390 = vld [vmem:[#allocation5 + $0xa8] sm:$0xff]
        %v391 = vld [vmem:[#allocation5 + $0xb0] sm:$0xff]
        %v392 = vld [vmem:[#allocation5 + $0xb8] sm:$0xff]
        %v393 = vld [vmem:[#allocation5 + $0xc0] sm:$0xff]
        %v394 = vld [vmem:[#allocation5 + $0xc8] sm:$0xff]
        %v395 = vld [vmem:[#allocation5 + $0xd0] sm:$0xff]
        %v396 = vld [vmem:[#allocation5 + $0xd8] sm:$0xff]
        %v397 = vld [vmem:[#allocation5 + $0xe0] sm:$0xff]
        %v398 = vld [vmem:[#allocation5 + $0xe8] sm:$0xff]
        %v399 = vld [vmem:[#allocation5 + $0xf0] sm:$0xff]
        %v400 = vld [vmem:[#allocation5 + $0xf8] sm:$0xff]
        %v401 = vld [vmem:[#allocation5 + $0x100] sm:$0xff]
        %v402 = vld [vmem:[#allocation5 + $0x108] sm:$0xff]
        %v403 = vld [vmem:[#allocation5 + $0x110] sm:$0xff]
        %v404 = vld [vmem:[#allocation5 + $0x118] sm:$0xff]
        %v405 = vld [vmem:[#allocation5 + $0x120] sm:$0xff]
        %v406 = vld [vmem:[#allocation5 + $0x128] sm:$0xff]
        %v407 = vld [vmem:[#allocation5 + $0x130] sm:$0xff]
        %v408 = vld [vmem:[#allocation5 + $0x138] sm:$0xff]
        %v409 = vld [vmem:[#allocation5 + $0x140] sm:$0xff]
        %v410 = vld [vmem:[#allocation5 + $0x148] sm:$0xff]
        %v411 = vld [vmem:[#allocation5 + $0x150] sm:$0xff]
        %v412 = vld [vmem:[#allocation5 + $0x158] sm:$0xff]
        %v413 = vld [vmem:[#allocation5 + $0x160] sm:$0xff]
        %v414 = vld [vmem:[#allocation5 + $0x168] sm:$0xff]
        %v415 = vld [vmem:[#allocation5 + $0x170] sm:$0xff]
        %v416 = vld [vmem:[#allocation5 + $0x178] sm:$0xff]
        %v417 = vld [vmem:[#allocation5 + $0x180] sm:$0xff]
        %v418 = vld [vmem:[#allocation5 + $0x188] sm:$0xff]
        %v419 = vld [vmem:[#allocation5 + $0x190] sm:$0xff]
        %v420 = vld [vmem:[#allocation5 + $0x198] sm:$0xff]
        %v421 = vld [vmem:[#allocation5 + $0x1a0] sm:$0xff]
        %v422 = vld [vmem:[#allocation5 + $0x1a8] sm:$0xff]
        %v423 = vld [vmem:[#allocation5 + $0x1b0] sm:$0xff]
        %v424 = vld [vmem:[#allocation5 + $0x1b8] sm:$0xff]
        %v425 = vld [vmem:[#allocation5 + $0x1c0] sm:$0xff]
        %v426 = vld [vmem:[#allocation5 + $0x1c8] sm:$0xff]
        %v427 = vld [vmem:[#allocation5 + $0x1d0] sm:$0xff]
        %v428 = vld [vmem:[#allocation5 + $0x1d8] sm:$0xff]
        %v429 = vld [vmem:[#allocation5 + $0x1e0] sm:$0xff]
        %v430 = vld [vmem:[#allocation5 + $0x1e8] sm:$0xff]
        %v431 = vld [vmem:[#allocation5 + $0x1f0] sm:$0xff]
        %v432 = vld [vmem:[#allocation5 + $0x1f8] sm:$0xff]
        %433 = vmatprep.subr.mxu0 %v370
        %434 = vmatpush1.msra.mxu0 %v369
        %435 = vmatprep.subr.mxu0 %v372
        %436 = vmatpush1.msra.mxu0 %v371
        %437 = vmatprep.subr.mxu0 %v374
        %438 = vmatpush1.msra.mxu0 %v373
        %439 = vmatprep.subr.mxu0 %v376
        %440 = vmatpush1.msra.mxu0 %v375
        %441 = vmatprep.subr.mxu0 %v378
        %442 = vmatpush1.msra.mxu0 %v377
        %443 = vmatprep.subr.mxu0 %v380
        %444 = vmatpush1.msra.mxu0 %v379
        %445 = vmatprep.subr.mxu0 %v382
        %446 = vmatpush1.msra.mxu0 %v381
        %447 = vmatprep.subr.mxu0 %v384
        %448 = vmatpush1.msra.mxu0 %v383
        %449 = vmatprep.subr.mxu0 %v386
        %450 = vmatpush1.msra.mxu0 %v385
        %451 = vmatprep.subr.mxu0 %v388
        %452 = vmatpush1.msra.mxu0 %v387
        %453 = vmatprep.subr.mxu0 %v390
        %454 = vmatpush1.msra.mxu0 %v389
        %455 = vmatprep.subr.mxu0 %v392
        %456 = vmatpush1.msra.mxu0 %v391
        %457 = vmatprep.subr.mxu0 %v394
        %458 = vmatpush1.msra.mxu0 %v393
        %459 = vmatprep.subr.mxu0 %v396
        %460 = vmatpush1.msra.mxu0 %v395
        %461 = vmatprep.subr.mxu0 %v398
        %462 = vmatpush1.msra.mxu0 %v397
        %463 = vmatprep.subr.mxu0 %v400
        %464 = vmatpush1.msra.mxu0 %v399
        %465 = vmatprep.subr.mxu0 %v402
        %466 = vmatpush1.msra.mxu0 %v401
        %467 = vmatprep.subr.mxu0 %v404
        %468 = vmatpush1.msra.mxu0 %v403
        %469 = vmatprep.subr.mxu0 %v406
        %470 = vmatpush1.msra.mxu0 %v405
        %471 = vmatprep.subr.mxu0 %v408
        %472 = vmatpush1.msra.mxu0 %v407
        %473 = vmatprep.subr.mxu0 %v410
        %474 = vmatpush1.msra.mxu0 %v409
        %475 = vmatprep.subr.mxu0 %v412
        %476 = vmatpush1.msra.mxu0 %v411
        %477 = vmatprep.subr.mxu0 %v414
        %478 = vmatpush1.msra.mxu0 %v413
        %479 = vmatprep.subr.mxu0 %v416
        %480 = vmatpush1.msra.mxu0 %v415
        %481 = vmatprep.subr.mxu0 %v418
        %482 = vmatpush1.msra.mxu0 %v417
        %483 = vmatprep.subr.mxu0 %v420
        %484 = vmatpush1.msra.mxu0 %v419
        %485 = vmatprep.subr.mxu0 %v422
        %486 = vmatpush1.msra.mxu0 %v421
        %487 = vmatprep.subr.mxu0 %v424
        %488 = vmatpush1.msra.mxu0 %v423
        %489 = vmatprep.subr.mxu0 %v426
        %490 = vmatpush1.msra.mxu0 %v425
        %491 = vmatprep.subr.mxu0 %v428
        %492 = vmatpush1.msra.mxu0 %v427
        %493 = vmatprep.subr.mxu0 %v430
        %494 = vmatpush1.msra.mxu0 %v429
        %495 = vmatprep.subr.mxu0 %v432
        %496 = vmatpush1.msra.mxu0 %v431
        %497 = vmatprep.mubr.f32.mxu0 %v367
        %498 = vmatmul.mubr.f32.gmra.mrb[0].mxu0 %v365
        %v499 = vpop.f32.mrb[0].mxu0
        %v500 = vadd.f32 0.0, %v499
        %v501 = vpop.f32.mrb[0].mxu0
        %v502 = vadd.f32 0.0, %v501
        %503 = vdwg.mxu0
        %v504 = vld [vmem:[%s4] sm:$0xff]
        %v505 = vld [vmem:[%s5] sm:$0xff]
        %507 = vset.pattern.permute.xlu0 0
        %508 = vperm.xlu0 %507, %v505
        %v509 = vpop.permute.xlu0 %508
        %vm511 = vcmask 31744
        %v513 = vsel %vm511, %v504, 0
        %vm515 = vcmask 1043456
        %v517 = vsel %vm515, %v500, 0
        %v520 = vsel %vm515, %v502, 0
        %522 = vmatprep.subr.mxu0 %v520
        %523 = vmatpush1.msra.mxu0 %v517
        %524 = vmatprep.subr.mxu0 0.0
        %525 = vmatpush1.msra.mxu0 0.0
        %526 = vmatprep.subr.mxu0 0.0
        %527 = vmatpush1.msra.mxu0 0.0
        %528 = vmatprep.subr.mxu0 0.0
        %529 = vmatpush1.msra.mxu0 0.0
        %530 = vmatprep.subr.mxu0 0.0
        %531 = vmatpush1.msra.mxu0 0.0
        %532 = vmatprep.subr.mxu0 0.0
        %533 = vmatpush1.msra.mxu0 0.0
        %534 = vmatprep.subr.mxu0 0.0
        %535 = vmatpush1.msra.mxu0 0.0
        %536 = vmatprep.subr.mxu0 0.0
        %537 = vmatpush1.msra.mxu0 0.0
        %538 = vmatprep.subr.mxu0 0.0
        %539 = vmatpush1.msra.mxu0 0.0
        %540 = vmatprep.subr.mxu0 0.0
        %541 = vmatpush1.msra.mxu0 0.0
        %542 = vmatprep.subr.mxu0 0.0
        %543 = vmatpush1.msra.mxu0 0.0
        %544 = vmatprep.subr.mxu0 0.0
        %545 = vmatpush1.msra.mxu0 0.0
        %546 = vmatprep.subr.mxu0 0.0
        %547 = vmatpush1.msra.mxu0 0.0
        %548 = vmatprep.subr.mxu0 0.0
        %549 = vmatpush1.msra.mxu0 0.0
        %550 = vmatprep.subr.mxu0 0.0
        %551 = vmatpush1.msra.mxu0 0.0
        %552 = vmatprep.subr.mxu0 0.0
        %553 = vmatpush1.msra.mxu0 0.0
        %554 = vmatprep.subr.mxu0 0.0
        %555 = vmatpush1.msra.mxu0 0.0
        %556 = vmatprep.subr.mxu0 0.0
        %557 = vmatpush1.msra.mxu0 0.0
        %558 = vmatprep.subr.mxu0 0.0
        %559 = vmatpush1.msra.mxu0 0.0
        %560 = vmatprep.subr.mxu0 0.0
        %561 = vmatpush1.msra.mxu0 0.0
        %562 = vmatprep.subr.mxu0 0.0
        %563 = vmatpush1.msra.mxu0 0.0
        %564 = vmatprep.subr.mxu0 0.0
        %565 = vmatpush1.msra.mxu0 0.0
        %566 = vmatprep.subr.mxu0 0.0
        %567 = vmatpush1.msra.mxu0 0.0
        %568 = vmatprep.subr.mxu0 0.0
        %569 = vmatpush1.msra.mxu0 0.0
        %570 = vmatprep.subr.mxu0 0.0
        %571 = vmatpush1.msra.mxu0 0.0
        %572 = vmatprep.subr.mxu0 0.0
        %573 = vmatpush1.msra.mxu0 0.0
        %574 = vmatprep.subr.mxu0 0.0
        %575 = vmatpush1.msra.mxu0 0.0
        %576 = vmatprep.subr.mxu0 0.0
        %577 = vmatpush1.msra.mxu0 0.0
        %578 = vmatprep.subr.mxu0 0.0
        %579 = vmatpush1.msra.mxu0 0.0
        %580 = vmatprep.subr.mxu0 0.0
        %581 = vmatpush1.msra.mxu0 0.0
        %582 = vmatprep.subr.mxu0 0.0
        %583 = vmatpush1.msra.mxu0 0.0
        %584 = vmatprep.subr.mxu0 0.0
        %585 = vmatpush1.msra.mxu0 0.0
        %586 = vmatprep.mubr.f32.mxu0 0.0
        %587 = vmatmul.mubr.f32.gmra.mrb[0].mxu0 %v513
        %v588 = vpop.f32.mrb[0].mxu0
        %v589 = vadd.f32 %v509, %v588
        %v590 = vpop.f32.mrb[0].mxu0
        %v591 = vadd.f32 %v509, %v590
        %592 = vdwg.mxu0
        %593 = vst [vmem:[%s282] sm:$0xff] %v589
        %594 = vst [vmem:[%s282 + $0x8] sm:$0xff] %v591
        %s595 = sand.u32 %s163, 1
        %s596 = scalar_lea.sflag [#allocation4], %s595
        %s597 = sand.u32 %s163, 1
        %s598 = smul.addr %s597, 16
        %s599 = scalar_lea.vmem [#allocation7], %s598
        // Predicated region
        $region53: #{tpu_custom_call.1} parent=43 // pred_check
          %p600 = pneg %p173
        $region54: #{tpu_custom_call.1} parent=43 // pred_check_branch
          %602 = sbr.rel (%p600) target = $region56
        $region55: #{tpu_custom_call.1} parent=43 // pred_region
          %s603 = smul.u32 2, %s24
          %s605 = ssub.s32 256, 256
          %606 = vsyncadd %s596, %s605
          %s607 = smul.addr %s603, 128
          %s608 = scalar_lea.hbm %s6, %s607
          %s610 = sshll.u32 %s599, 4
          %s611 = int_to_ptr.vmem [resolvable:$true] %s610
          %613 = dma.vmem_to_hbm [thread:$0]  %s611, 256, %s608, %s596
        $region56: #{tpu_custom_call.1} parent=43 // pred_fallthru
          _
      $region44: #{tpu_custom_call.1} parent=5 // pred_fallthru
        _
      %p614 = scmp.le.s32.totalorder 2, %s19
      // Predicated region
      $region57: #{tpu_custom_call.1} parent=5 // pred_check
        %p615 = pneg %p614
      $region58: #{tpu_custom_call.1} parent=5 // pred_check_branch
        %617 = sbr.rel (%p615) target = $region60
      $region59: #{tpu_custom_call.1} parent=5 // pred_region
        %s618 = ssub.s32 %s19, 2
        // Predicated region
        $region61: #{tpu_custom_call.1} parent=59 // pred_check
          %p619 = pneg %p179
        $region62: #{tpu_custom_call.1} parent=59 // pred_check_branch
          %621 = sbr.rel (%p619) target = $region64
        $region63: #{tpu_custom_call.1} parent=59 // pred_region
          %s622 = sand.u32 %s164, 1
          %s623 = scalar_lea.sflag [#allocation4], %s622
          %s624 = sand.u32 %s164, 1
          %s625 = smul.addr %s624, 16
          %s626 = scalar_lea.vmem [#allocation7], %s625
          %627 = dma.done %s623, 256
        $region64: #{tpu_custom_call.1} parent=59 // pred_fallthru
          _
      $region60: #{tpu_custom_call.1} parent=5 // pred_fallthru
        _
    $region6: #{tpu_custom_call.1} parent=1 // loop_footer
      %s23 = sadd.s32 1, %s19
    $region7: #{tpu_custom_call.1} parent=1 // loop_footer_branch
      %18 = sbr.rel target = $region3
    $region8: #{tpu_custom_call.1} parent=1 // loop_exit
      _
    %628 = vsyncpa [#allocation3], 1
    %s629 = scalar_lea.sflag [#allocation3], 1
    %630 = vsyncpa %s629, 1
    %631 = vsyncpa [#allocation6], 1
    %632 = vsyncpa [#allocation4], 1
    %s633 = scalar_lea.sflag [#allocation4], 1
    %634 = vsyncpa %s633, 1

</llo_original>
